<compile_context>
chip_gen: v6e
topology: v6e:2x2x1
jax: 0.10.0
libtpu: 0.0.40
codegen_flags: <defaults>
</compile_context>

<pallas_src>
import functools

import jax
import jax.numpy as jnp
from jax import lax
from jax.experimental import pallas as pl
from jax.experimental.pallas import tpu as pltpu


_OFFSETS = tuple((oy, ox) for oy in (-1, 0, 1) for ox in (-1, 0, 1))


def _conv3x3_im2col_dot(h, w_packed, bias, mask, img_w):
    """3x3 'SAME' conv in (Cin, L) layout (L = N*H*W) via one im2col matmul.

    h:        (Cin, L)      float32, lane axis = flattened (n, y, x).
    w_packed: (Cout, 9*Cin) bfloat16, tap-major / channel-minor rows.
    bias:     (Cout, 1)     float32.
    mask:     (9, L)        float32 per-tap zero-padding validity mask.
    img_w:    static image width (turns (dy, dx) into a flat lane shift).
    """
    L = h.shape[1]
    taps = []
    for idx, (oy, ox) in enumerate(_OFFSETS):
        s = oy * img_w + ox                      # want tap[i] = h[i + s]
        if s == 0:
            taps.append(h)                       # center tap: always valid
        else:
            # roll: out[i] = h[(i + s) % L]; wrapped lanes zeroed by mask
            # (cross-image wraps are exactly the out-of-bounds taps).
            rolled = pltpu.roll(h, shift=(-s) % L, axis=1)
            taps.append(rolled * mask[idx:idx + 1, :])
    patches = jnp.concatenate(taps, axis=0).astype(jnp.bfloat16)   # (9Cin, L)
    acc = jnp.dot(w_packed, patches, preferred_element_type=jnp.float32)
    return acc + bias


def _sample_z_kernel(x_ref, mask_ref, w1_ref, b1_ref, wc_ref, bc_ref,
                     noise_ref, out_ref, *, img_w, z_dim):
    mask = mask_ref[...]                                            # (9, L)

    # conv1: (C, 9C) @ (9C, L)
    h1 = _conv3x3_im2col_dot(x_ref[...], w1_ref[...], b1_ref[...], mask, img_w)
    # conv2 with the mu|sigma 1x1 heads folded in: (2Z, 9C) @ (9C, L)
    heads = _conv3x3_im2col_dot(h1, wc_ref[...], bc_ref[...], mask, img_w)

    mu = heads[0:z_dim, :]
    s = heads[z_dim:2 * z_dim, :]
    # PyTorch Softplus (beta=1, threshold=20).
    sigma = jnp.where(s > 20.0, s, jnp.log1p(jnp.exp(jnp.minimum(s, 20.0))))
    z = mu + sigma * noise_ref[...]

    # Single merged store: rows [mu; sigma; z].
    out_ref[...] = jnp.concatenate([mu, sigma, z], axis=0)


def sample_z_block(x_nchw, params, noise_key):
    """x_nchw: (N, C, H, W) float32. Returns (mu, sigma, z, noise) in NCHW."""
    N, C, H, W = x_nchw.shape
    Z = params["wmu"].shape[1]
    HW = H * W
    L = N * HW

    # Fold batch into the lane axis: (N, C, H, W) -> (C, N*H*W).
    x = jnp.transpose(x_nchw, (1, 0, 2, 3)).reshape(C, L).astype(jnp.float32)
    noise = jax.random.normal(noise_key, (Z, L), dtype=jnp.float32)

    # Per-tap zero-padding validity mask (9, HW), tiled over the N images.
    ys = jnp.arange(H)[:, None]
    xs = jnp.arange(W)[None, :]
    tap_masks = [((ys + oy >= 0) & (ys + oy < H) &
                  (xs + ox >= 0) & (xs + ox < W)).reshape(HW)
                 for oy, ox in _OFFSETS]
    mask = jnp.tile(jnp.stack(tap_masks).astype(jnp.float32), (1, N))  # (9, L)

    # Pre-pack weights: (9, Cin, Cout) -> (Cout, 9*Cin); biases -> (Cout, 1).
    pack = lambda w: jnp.transpose(w, (2, 0, 1)).reshape(w.shape[2], -1)
    w1p = pack(params["w1"])                                        # (C, 9C)
    w2p = pack(params["w2"])                                        # (C, 9C)
    wh = jnp.concatenate([params["wmu"].T, params["wsig"].T], axis=0)   # (2Z, C)
    bh = jnp.concatenate([params["bmu"].T, params["bsig"].T], axis=0)   # (2Z, 1)
    # Fuse the 1x1 heads into conv2:  heads = Wh @ (W2 @ p + b2) + bh.
    wcomp = jnp.dot(wh, w2p, precision=lax.Precision.HIGHEST)       # (2Z, 9C)
    bcomp = jnp.dot(wh, params["b2"].T,
                    precision=lax.Precision.HIGHEST) + bh           # (2Z, 1)

    w1_bf = w1p.astype(jnp.bfloat16)
    wc_bf = wcomp.astype(jnp.bfloat16)
    b1p = params["b1"].T                                            # (C, 1)

    full = lambda a: pl.BlockSpec(a.shape, lambda i, _r=a.ndim: (0,) * _r)

    kernel = functools.partial(_sample_z_kernel, img_w=W, z_dim=Z)

    grid_spec = pltpu.PrefetchScalarGridSpec(
        num_scalar_prefetch=0,
        grid=(1,),                                # whole problem, one step
        in_specs=[full(x), full(mask),
                  full(w1_bf), full(b1p), full(wc_bf), full(bcomp),
                  full(noise)],
        out_specs=pl.BlockSpec((3 * Z, L), lambda i: (0, 0)),
    )

    out = pl.pallas_call(
        kernel,
        out_shape=jax.ShapeDtypeStruct((3 * Z, L), jnp.float32),
        grid_spec=grid_spec,
        compiler_params=pltpu.CompilerParams(
            dimension_semantics=("arbitrary",)),
    )(x, mask, w1_bf, b1p, wc_bf, bcomp, noise)

    # (3Z, N*HW) -> three (N, Z, H, W) tensors; reshape + transpose only.
    out5 = jnp.transpose(out.reshape(3, Z, N, H, W), (0, 2, 1, 3, 4))
    mu, sigma, z = out5[0], out5[1], out5[2]
    noise_nchw = jnp.transpose(noise.reshape(Z, N, H, W), (1, 0, 2, 3))
    return mu, sigma, z, noise_nchw


def init_params(key, input_dim, z_dim0):
    """Deterministic synthetic parameters (shapes follow nn.Conv2d)."""
    C, Z = input_dim, z_dim0
    ks = jax.random.split(key, 8)
    s3 = 1.0 / (9 * C) ** 0.5
    s1 = 1.0 / C ** 0.5
    u = lambda k, shp, s: jax.random.uniform(k, shp, jnp.float32, -s, s)
    return dict(
        w1=u(ks[0], (9, C, C), s3), b1=u(ks[1], (1, C), s3),   # (kh*kw, Cin, Cout)
        w2=u(ks[2], (9, C, C), s3), b2=u(ks[3], (1, C), s3),
        wmu=u(ks[4], (C, Z), s1), bmu=u(ks[5], (1, Z), s1),
        wsig=u(ks[6], (C, Z), s1), bsig=u(ks[7], (1, Z), s1),
    )


def reference(x_nchw, params, noise_nchw):
    """Pure-JAX reference (XLA convs) for validation, NCHW in/out."""
    C = x_nchw.shape[1]
    x = jnp.transpose(x_nchw, (0, 2, 3, 1)).astype(jnp.float32)
    dn = lax.conv_dimension_numbers(x.shape, (3, 3, C, C), ("NHWC", "HWIO", "NHWC"))
    w1 = params["w1"].reshape(3, 3, C, C)
    w2 = params["w2"].reshape(3, 3, C, C)
    h = lax.conv_general_dilated(x, w1, (1, 1), "SAME", dimension_numbers=dn,
                                 precision=lax.Precision.HIGHEST) + params["b1"]
    h = lax.conv_general_dilated(h, w2, (1, 1), "SAME", dimension_numbers=dn,
                                 precision=lax.Precision.HIGHEST) + params["b2"]
    mu = jnp.einsum("nhwc,cz->nhwz", h, params["wmu"],
                    precision=lax.Precision.HIGHEST) + params["bmu"]
    s = jnp.einsum("nhwc,cz->nhwz", h, params["wsig"],
                   precision=lax.Precision.HIGHEST) + params["bsig"]
    sigma = jnp.where(s > 20.0, s, jnp.log1p(jnp.exp(jnp.minimum(s, 20.0))))
    to_nchw = lambda t: jnp.transpose(t, (0, 3, 1, 2))
    mu, sigma = to_nchw(mu), to_nchw(sigma)
    z = mu + sigma * noise_nchw
    return mu, sigma, z


if __name__ == "__main__":
    N, C, H, W, Z = 2, 8, 16, 16, 2        # input_dim=8, z_dim0=2
    key = jax.random.PRNGKey(0)
    k_x, k_p, k_n = jax.random.split(key, 3)

    x = jax.random.normal(k_x, (N, C, H, W), dtype=jnp.float32)
    params = init_params(k_p, C, Z)

    mu, sigma, z, noise = sample_z_block(x, params, k_n)
    jax.block_until_ready((mu, sigma, z))

    mu_r, sigma_r, z_r = reference(x, params, noise)
    assert mu.shape == (N, Z, H, W) and sigma.shape == (N, Z, H, W) and z.shape == (N, Z, H, W)
    assert jnp.all(jnp.isfinite(mu)) and jnp.all(jnp.isfinite(sigma)) and jnp.all(jnp.isfinite(z))
    # loose tolerance: in-kernel dots use bf16 operands with f32 accumulation
    assert jnp.allclose(mu, mu_r, atol=5e-2, rtol=5e-2)
    assert jnp.allclose(sigma, sigma_r, atol=5e-2, rtol=5e-2)
    assert jnp.allclose(z, z_r, atol=5e-2, rtol=5e-2)

    print("KERNEL_OK")
</pallas_src>

<mosaic_0001>
module attributes {stable_mosaic.version = 11 : i64} {
  func.func @_sample_z_kernel(%arg0: i32, %arg1: memref<8x512xf32, #tpu.memory_space<vmem>>, %arg2: memref<9x512xf32, #tpu.memory_space<vmem>>, %arg3: memref<8x72xbf16, #tpu.memory_space<vmem>>, %arg4: memref<8x1xf32, #tpu.memory_space<vmem>>, %arg5: memref<4x72xbf16, #tpu.memory_space<vmem>>, %arg6: memref<4x1xf32, #tpu.memory_space<vmem>>, %arg7: memref<2x512xf32, #tpu.memory_space<vmem>>, %arg8: memref<6x512xf32, #tpu.memory_space<vmem>>) attributes {dimension_semantics = [#tpu.dimension_semantics<arbitrary>], iteration_bounds = array<i64: 1>, scalar_prefetch = 0 : i64, scratch_operands = 0 : i64, tpu.core_type = #tpu.core_type<tc>, window_params = [{pipeline_mode = #tpu.pipeline_mode<synchronous>, transform_indices = @transform_0, window_bounds = array<i64: 8, 512>}, {pipeline_mode = #tpu.pipeline_mode<synchronous>, transform_indices = @transform_1, window_bounds = array<i64: 9, 512>}, {pipeline_mode = #tpu.pipeline_mode<synchronous>, transform_indices = @transform_2, window_bounds = array<i64: 8, 72>}, {pipeline_mode = #tpu.pipeline_mode<synchronous>, transform_indices = @transform_3, window_bounds = array<i64: 8, 1>}, {pipeline_mode = #tpu.pipeline_mode<synchronous>, transform_indices = @transform_4, window_bounds = array<i64: 4, 72>}, {pipeline_mode = #tpu.pipeline_mode<synchronous>, transform_indices = @transform_5, window_bounds = array<i64: 4, 1>}, {pipeline_mode = #tpu.pipeline_mode<synchronous>, transform_indices = @transform_6, window_bounds = array<i64: 2, 512>}, {pipeline_mode = #tpu.pipeline_mode<synchronous>, transform_indices = @transform_7, window_bounds = array<i64: 6, 512>}]} {
    %c0 = arith.constant 0 : index
    %c0_0 = arith.constant 0 : index
    %0 = vector.load %arg2[%c0, %c0_0] : memref<9x512xf32, #tpu.memory_space<vmem>>, vector<9x512xf32>
    %c0_1 = arith.constant 0 : index
    %c0_2 = arith.constant 0 : index
    %1 = vector.load %arg1[%c0_1, %c0_2] : memref<8x512xf32, #tpu.memory_space<vmem>>, vector<8x512xf32>
    %c0_3 = arith.constant 0 : index
    %c0_4 = arith.constant 0 : index
    %2 = vector.load %arg3[%c0_3, %c0_4] : memref<8x72xbf16, #tpu.memory_space<vmem>>, vector<8x72xbf16>
    %c0_5 = arith.constant 0 : index
    %c0_6 = arith.constant 0 : index
    %3 = vector.load %arg4[%c0_5, %c0_6] : memref<8x1xf32, #tpu.memory_space<vmem>>, vector<8x1xf32>
    %c17_i32 = arith.constant 17 : i32
    %4 = tpu.dynamic_rotate %1 by %c17_i32 dim 1 : vector<8x512xf32>, i32 -> vector<8x512xf32>
    %5 = vector.extract_strided_slice %0 {offsets = [0, 0], sizes = [1, 512], strides = [1, 1]} : vector<9x512xf32> to vector<1x512xf32>
    %6 = vector.broadcast %5 : vector<1x512xf32> to vector<8x512xf32>
    %7 = arith.mulf %4, %6 : vector<8x512xf32>
    %c16_i32 = arith.constant 16 : i32
    %8 = tpu.dynamic_rotate %1 by %c16_i32 dim 1 : vector<8x512xf32>, i32 -> vector<8x512xf32>
    %9 = vector.extract_strided_slice %0 {offsets = [1, 0], sizes = [1, 512], strides = [1, 1]} : vector<9x512xf32> to vector<1x512xf32>
    %10 = vector.broadcast %9 : vector<1x512xf32> to vector<8x512xf32>
    %11 = arith.mulf %8, %10 : vector<8x512xf32>
    %c15_i32 = arith.constant 15 : i32
    %12 = tpu.dynamic_rotate %1 by %c15_i32 dim 1 : vector<8x512xf32>, i32 -> vector<8x512xf32>
    %13 = vector.extract_strided_slice %0 {offsets = [2, 0], sizes = [1, 512], strides = [1, 1]} : vector<9x512xf32> to vector<1x512xf32>
    %14 = vector.broadcast %13 : vector<1x512xf32> to vector<8x512xf32>
    %15 = arith.mulf %12, %14 : vector<8x512xf32>
    %c1_i32 = arith.constant 1 : i32
    %16 = tpu.dynamic_rotate %1 by %c1_i32 dim 1 : vector<8x512xf32>, i32 -> vector<8x512xf32>
    %17 = vector.extract_strided_slice %0 {offsets = [3, 0], sizes = [1, 512], strides = [1, 1]} : vector<9x512xf32> to vector<1x512xf32>
    %18 = vector.broadcast %17 : vector<1x512xf32> to vector<8x512xf32>
    %19 = arith.mulf %16, %18 : vector<8x512xf32>
    %c511_i32 = arith.constant 511 : i32
    %20 = tpu.dynamic_rotate %1 by %c511_i32 dim 1 : vector<8x512xf32>, i32 -> vector<8x512xf32>
    %21 = vector.extract_strided_slice %0 {offsets = [5, 0], sizes = [1, 512], strides = [1, 1]} : vector<9x512xf32> to vector<1x512xf32>
    %22 = vector.broadcast %21 : vector<1x512xf32> to vector<8x512xf32>
    %23 = arith.mulf %20, %22 : vector<8x512xf32>
    %c497_i32 = arith.constant 497 : i32
    %24 = tpu.dynamic_rotate %1 by %c497_i32 dim 1 : vector<8x512xf32>, i32 -> vector<8x512xf32>
    %25 = vector.extract_strided_slice %0 {offsets = [6, 0], sizes = [1, 512], strides = [1, 1]} : vector<9x512xf32> to vector<1x512xf32>
    %26 = vector.broadcast %25 : vector<1x512xf32> to vector<8x512xf32>
    %27 = arith.mulf %24, %26 : vector<8x512xf32>
    %c496_i32 = arith.constant 496 : i32
    %28 = tpu.dynamic_rotate %1 by %c496_i32 dim 1 : vector<8x512xf32>, i32 -> vector<8x512xf32>
    %29 = vector.extract_strided_slice %0 {offsets = [7, 0], sizes = [1, 512], strides = [1, 1]} : vector<9x512xf32> to vector<1x512xf32>
    %30 = vector.broadcast %29 : vector<1x512xf32> to vector<8x512xf32>
    %31 = arith.mulf %28, %30 : vector<8x512xf32>
    %c495_i32 = arith.constant 495 : i32
    %32 = tpu.dynamic_rotate %1 by %c495_i32 dim 1 : vector<8x512xf32>, i32 -> vector<8x512xf32>
    %33 = vector.extract_strided_slice %0 {offsets = [8, 0], sizes = [1, 512], strides = [1, 1]} : vector<9x512xf32> to vector<1x512xf32>
    %34 = vector.broadcast %33 : vector<1x512xf32> to vector<8x512xf32>
    %35 = arith.mulf %32, %34 : vector<8x512xf32>
    %36 = tpu.concatenate %7, %11, %15, %19, %1, %23, %27, %31, %35 in 0 : vector<8x512xf32>, vector<8x512xf32>, vector<8x512xf32>, vector<8x512xf32>, vector<8x512xf32>, vector<8x512xf32>, vector<8x512xf32>, vector<8x512xf32>, vector<8x512xf32> -> vector<72x512xf32>
    %37 = arith.truncf %36 : vector<72x512xf32> to vector<72x512xbf16>
    %cst = arith.constant dense<0.000000e+00> : vector<8x512xf32>
    %38 = tpu.matmul %2, %37, %cst {dimension_numbers = #tpu.dot_dimension_numbers<[1], [0], [0], [1], [0, 0, 1, 1], [], []>} : vector<8x72xbf16>, vector<72x512xbf16>, vector<8x512xf32> -> vector<8x512xf32>
    %39 = vector.broadcast %3 : vector<8x1xf32> to vector<8x512xf32>
    %40 = arith.addf %38, %39 : vector<8x512xf32>
    %c0_7 = arith.constant 0 : index
    %c0_8 = arith.constant 0 : index
    %41 = vector.load %arg5[%c0_7, %c0_8] : memref<4x72xbf16, #tpu.memory_space<vmem>>, vector<4x72xbf16>
    %c0_9 = arith.constant 0 : index
    %c0_10 = arith.constant 0 : index
    %42 = vector.load %arg6[%c0_9, %c0_10] : memref<4x1xf32, #tpu.memory_space<vmem>>, vector<4x1xf32>
    %c17_i32_11 = arith.constant 17 : i32
    %43 = tpu.dynamic_rotate %40 by %c17_i32_11 dim 1 : vector<8x512xf32>, i32 -> vector<8x512xf32>
    %44 = vector.extract_strided_slice %0 {offsets = [0, 0], sizes = [1, 512], strides = [1, 1]} : vector<9x512xf32> to vector<1x512xf32>
    %45 = vector.broadcast %44 : vector<1x512xf32> to vector<8x512xf32>
    %46 = arith.mulf %43, %45 : vector<8x512xf32>
    %c16_i32_12 = arith.constant 16 : i32
    %47 = tpu.dynamic_rotate %40 by %c16_i32_12 dim 1 : vector<8x512xf32>, i32 -> vector<8x512xf32>
    %48 = vector.extract_strided_slice %0 {offsets = [1, 0], sizes = [1, 512], strides = [1, 1]} : vector<9x512xf32> to vector<1x512xf32>
    %49 = vector.broadcast %48 : vector<1x512xf32> to vector<8x512xf32>
    %50 = arith.mulf %47, %49 : vector<8x512xf32>
    %c15_i32_13 = arith.constant 15 : i32
    %51 = tpu.dynamic_rotate %40 by %c15_i32_13 dim 1 : vector<8x512xf32>, i32 -> vector<8x512xf32>
    %52 = vector.extract_strided_slice %0 {offsets = [2, 0], sizes = [1, 512], strides = [1, 1]} : vector<9x512xf32> to vector<1x512xf32>
    %53 = vector.broadcast %52 : vector<1x512xf32> to vector<8x512xf32>
    %54 = arith.mulf %51, %53 : vector<8x512xf32>
    %c1_i32_14 = arith.constant 1 : i32
    %55 = tpu.dynamic_rotate %40 by %c1_i32_14 dim 1 : vector<8x512xf32>, i32 -> vector<8x512xf32>
    %56 = vector.extract_strided_slice %0 {offsets = [3, 0], sizes = [1, 512], strides = [1, 1]} : vector<9x512xf32> to vector<1x512xf32>
    %57 = vector.broadcast %56 : vector<1x512xf32> to vector<8x512xf32>
    %58 = arith.mulf %55, %57 : vector<8x512xf32>
    %c511_i32_15 = arith.constant 511 : i32
    %59 = tpu.dynamic_rotate %40 by %c511_i32_15 dim 1 : vector<8x512xf32>, i32 -> vector<8x512xf32>
    %60 = vector.extract_strided_slice %0 {offsets = [5, 0], sizes = [1, 512], strides = [1, 1]} : vector<9x512xf32> to vector<1x512xf32>
    %61 = vector.broadcast %60 : vector<1x512xf32> to vector<8x512xf32>
    %62 = arith.mulf %59, %61 : vector<8x512xf32>
    %c497_i32_16 = arith.constant 497 : i32
    %63 = tpu.dynamic_rotate %40 by %c497_i32_16 dim 1 : vector<8x512xf32>, i32 -> vector<8x512xf32>
    %64 = vector.extract_strided_slice %0 {offsets = [6, 0], sizes = [1, 512], strides = [1, 1]} : vector<9x512xf32> to vector<1x512xf32>
    %65 = vector.broadcast %64 : vector<1x512xf32> to vector<8x512xf32>
    %66 = arith.mulf %63, %65 : vector<8x512xf32>
    %c496_i32_17 = arith.constant 496 : i32
    %67 = tpu.dynamic_rotate %40 by %c496_i32_17 dim 1 : vector<8x512xf32>, i32 -> vector<8x512xf32>
    %68 = vector.extract_strided_slice %0 {offsets = [7, 0], sizes = [1, 512], strides = [1, 1]} : vector<9x512xf32> to vector<1x512xf32>
    %69 = vector.broadcast %68 : vector<1x512xf32> to vector<8x512xf32>
    %70 = arith.mulf %67, %69 : vector<8x512xf32>
    %c495_i32_18 = arith.constant 495 : i32
    %71 = tpu.dynamic_rotate %40 by %c495_i32_18 dim 1 : vector<8x512xf32>, i32 -> vector<8x512xf32>
    %72 = vector.extract_strided_slice %0 {offsets = [8, 0], sizes = [1, 512], strides = [1, 1]} : vector<9x512xf32> to vector<1x512xf32>
    %73 = vector.broadcast %72 : vector<1x512xf32> to vector<8x512xf32>
    %74 = arith.mulf %71, %73 : vector<8x512xf32>
    %75 = tpu.concatenate %46, %50, %54, %58, %40, %62, %66, %70, %74 in 0 : vector<8x512xf32>, vector<8x512xf32>, vector<8x512xf32>, vector<8x512xf32>, vector<8x512xf32>, vector<8x512xf32>, vector<8x512xf32>, vector<8x512xf32>, vector<8x512xf32> -> vector<72x512xf32>
    %76 = arith.truncf %75 : vector<72x512xf32> to vector<72x512xbf16>
    %cst_19 = arith.constant dense<0.000000e+00> : vector<4x512xf32>
    %77 = tpu.matmul %41, %76, %cst_19 {dimension_numbers = #tpu.dot_dimension_numbers<[1], [0], [0], [1], [0, 0, 1, 1], [], []>} : vector<4x72xbf16>, vector<72x512xbf16>, vector<4x512xf32> -> vector<4x512xf32>
    %78 = vector.broadcast %42 : vector<4x1xf32> to vector<4x512xf32>
    %79 = arith.addf %77, %78 : vector<4x512xf32>
    %80 = vector.extract_strided_slice %79 {offsets = [0, 0], sizes = [2, 512], strides = [1, 1]} : vector<4x512xf32> to vector<2x512xf32>
    %81 = vector.extract_strided_slice %79 {offsets = [2, 0], sizes = [2, 512], strides = [1, 1]} : vector<4x512xf32> to vector<2x512xf32>
    %cst_20 = arith.constant 2.000000e+01 : f32
    %82 = vector.broadcast %cst_20 : f32 to vector<2x512xf32>
    %83 = arith.cmpf ogt, %81, %82 : vector<2x512xf32>
    %cst_21 = arith.constant 2.000000e+01 : f32
    %84 = vector.broadcast %cst_21 : f32 to vector<2x512xf32>
    %85 = arith.minimumf %81, %84 : vector<2x512xf32>
    %86 = math.exp %85 : vector<2x512xf32>
    %87 = math.log1p %86 : vector<2x512xf32>
    %88 = arith.select %83, %81, %87 : vector<2x512xi1>, vector<2x512xf32>
    %c0_22 = arith.constant 0 : index
    %c0_23 = arith.constant 0 : index
    %89 = vector.load %arg7[%c0_22, %c0_23] : memref<2x512xf32, #tpu.memory_space<vmem>>, vector<2x512xf32>
    %90 = arith.mulf %88, %89 : vector<2x512xf32>
    %91 = arith.addf %80, %90 : vector<2x512xf32>
    %92 = tpu.concatenate %80, %88, %91 in 0 : vector<2x512xf32>, vector<2x512xf32>, vector<2x512xf32> -> vector<6x512xf32>
    %c0_24 = arith.constant 0 : index
    %c0_25 = arith.constant 0 : index
    %93 = vector.load %arg8[%c0_24, %c0_25] : memref<6x512xf32, #tpu.memory_space<vmem>>, vector<6x512xf32>
    tpu.vector_store %arg8[%c0_24, %c0_25], %92 {strides = array<i32>} : memref<6x512xf32, #tpu.memory_space<vmem>>, vector<6x512xf32>,
    return
  }
  func.func @transform_0(%arg0: i32) -> (i32, i32) {
    %c0_i32 = arith.constant 0 : i32
    %c0_i32_0 = arith.constant 0 : i32
    %c0_i32_1 = arith.constant 0 : i32
    return %c0_i32, %c0_i32_0 : i32, i32
  }
  func.func @transform_1(%arg0: i32) -> (i32, i32) {
    %c0_i32 = arith.constant 0 : i32
    %c0_i32_0 = arith.constant 0 : i32
    %c0_i32_1 = arith.constant 0 : i32
    return %c0_i32, %c0_i32_0 : i32, i32
  }
  func.func @transform_2(%arg0: i32) -> (i32, i32) {
    %c0_i32 = arith.constant 0 : i32
    %c0_i32_0 = arith.constant 0 : i32
    %c0_i32_1 = arith.constant 0 : i32
    return %c0_i32, %c0_i32_0 : i32, i32
  }
  func.func @transform_3(%arg0: i32) -> (i32, i32) {
    %c0_i32 = arith.constant 0 : i32
    %c0_i32_0 = arith.constant 0 : i32
    %c0_i32_1 = arith.constant 0 : i32
    return %c0_i32, %c0_i32_0 : i32, i32
  }
  func.func @transform_4(%arg0: i32) -> (i32, i32) {
    %c0_i32 = arith.constant 0 : i32
    %c0_i32_0 = arith.constant 0 : i32
    %c0_i32_1 = arith.constant 0 : i32
    return %c0_i32, %c0_i32_0 : i32, i32
  }
  func.func @transform_5(%arg0: i32) -> (i32, i32) {
    %c0_i32 = arith.constant 0 : i32
    %c0_i32_0 = arith.constant 0 : i32
    %c0_i32_1 = arith.constant 0 : i32
    return %c0_i32, %c0_i32_0 : i32, i32
  }
  func.func @transform_6(%arg0: i32) -> (i32, i32) {
    %c0_i32 = arith.constant 0 : i32
    %c0_i32_0 = arith.constant 0 : i32
    %c0_i32_1 = arith.constant 0 : i32
    return %c0_i32, %c0_i32_0 : i32, i32
  }
  func.func @transform_7(%arg0: i32) -> (i32, i32) {
    %c0_i32 = arith.constant 0 : i32
    %c0_i32_0 = arith.constant 0 : i32
    %c0_i32_1 = arith.constant 0 : i32
    return %c0_i32, %c0_i32_0 : i32, i32
  }
}

</mosaic_0001>

<llo_original>
// kernel: tpu_custom_call.1
$region0: #{tpu_custom_call.1}
  #allocation0 [shape = 'u32[]', space=smem, size = 0x4, offset = 0x4, fixed_abs, tag = 'smem constant byte address 0x4 - core index']
  #allocation1 [shape = 'u32[144,128]{1,0:T(1,128)}', space=vmem, size = 0x12000, scoped, tag = 'internal scratch']
  %s0 = inlined_call_operand.hbm [shape: f32[8,512], index: 0, kind: input, shape index: {}]
  %s1 = inlined_call_operand.hbm [shape: f32[9,512], index: 1, kind: input, shape index: {}]
  %s2 = inlined_call_operand.vmem [shape: bf16[8,72], index: 2, kind: input, shape index: {}]
  %s3 = inlined_call_operand.vmem [shape: f32[8,1], index: 3, kind: input, shape index: {}]
  %s4 = inlined_call_operand.vmem [shape: bf16[4,72], index: 4, kind: input, shape index: {}]
  %s5 = inlined_call_operand.vmem [shape: f32[4,1], index: 5, kind: input, shape index: {}]
  %s6 = inlined_call_operand.vmem [shape: f32[2,512], index: 6, kind: input, shape index: {}]
  %s7 = inlined_call_operand.hbm [shape: f32[6,512], index: 7, kind: output, shape index: {}]
  %s8 = sld [smem:[#allocation0]]
  $region46: #{tpu_custom_call.1} parent=0
    _
  %s10 = ssub.s32 1, %s8
  %s11 = scalar_select 0, %s10, %s8
  $region1: #{tpu_custom_call.1} parent=0
    #allocation2 [shape = 'u8[16384]{0}', space=vmem, size = 0x4000, scoped, tag = 'input window, operand 0, single buffered']
    #allocation3 [shape = 's32[1]{0}', space=sflag, size = 0x4, scoped, tag = 'scoped memory for tpu_custom_call.1']
    #allocation4 [shape = 's32[1]{0}', space=sflag, size = 0x4, scoped, tag = 'scoped memory for tpu_custom_call.1']
    #allocation5 [shape = 'u8[32768]{0}', space=vmem, size = 0x8000, scoped, tag = 'input window, operand 1, single buffered']
    #allocation6 [shape = 's32[1]{0}', space=sflag, size = 0x4, scoped, tag = 'scoped memory for tpu_custom_call.1']
    #allocation7 [shape = 'u8[16384]{0}', space=vmem, size = 0x4000, scoped, tag = 'output window, operand 0, single buffered']
    %12 = vsyncpa [#allocation3], 0
    %13 = vsyncpa [#allocation6], 0
    %14 = vsyncpa [#allocation4], 0
    // Predicated region
    $region2: #{tpu_custom_call.1} parent=1 // pred_check
      _
    $region3: #{tpu_custom_call.1} parent=1 // pred_check_branch
      %16 = sbr.rel (0) target = $region5
    $region4: #{tpu_custom_call.1} parent=1 // pred_region
      %s18 = ssub.s32 512, 512
      %19 = vsyncadd [#allocation3], %s18
      %s21 = sshll.u32 [#allocation2], 4
      %s22 = int_to_ptr.vmem [resolvable:$true] %s21
      %24 = dma.hbm_to_vmem [thread:$0]  %s0, 512, %s22, [#allocation3]
    $region5: #{tpu_custom_call.1} parent=1 // pred_fallthru
      _
    // Predicated region
    $region6: #{tpu_custom_call.1} parent=1 // pred_check
      _
    $region7: #{tpu_custom_call.1} parent=1 // pred_check_branch
      %26 = sbr.rel (0) target = $region9
    $region8: #{tpu_custom_call.1} parent=1 // pred_region
      %s28 = ssub.s32 1024, 1024
      %29 = vsyncadd [#allocation6], %s28
      %s30 = sshll.u32 [#allocation5], 4
      %s31 = int_to_ptr.vmem [resolvable:$true] %s30
      %36 = dma.hbm_to_vmem [thread:$0]  %s1, 1024, %s31, [#allocation6], 512, 512, 32
    $region9: #{tpu_custom_call.1} parent=1 // pred_fallthru
      _
    // Predicated region
    $region10: #{tpu_custom_call.1} parent=1 // pred_check
      _
    $region11: #{tpu_custom_call.1} parent=1 // pred_check_branch
      %38 = sbr.rel (0) target = $region13
    $region12: #{tpu_custom_call.1} parent=1 // pred_region
      _
    $region13: #{tpu_custom_call.1} parent=1 // pred_fallthru
      _
    // Predicated region
    $region14: #{tpu_custom_call.1} parent=1 // pred_check
      _
    $region15: #{tpu_custom_call.1} parent=1 // pred_check_branch
      %40 = sbr.rel (0) target = $region17
    $region16: #{tpu_custom_call.1} parent=1 // pred_region
      _
    $region17: #{tpu_custom_call.1} parent=1 // pred_fallthru
      _
    // Predicated region
    $region18: #{tpu_custom_call.1} parent=1 // pred_check
      _
    $region19: #{tpu_custom_call.1} parent=1 // pred_check_branch
      %42 = sbr.rel (0) target = $region21
    $region20: #{tpu_custom_call.1} parent=1 // pred_region
      _
    $region21: #{tpu_custom_call.1} parent=1 // pred_fallthru
      _
    // Predicated region
    $region22: #{tpu_custom_call.1} parent=1 // pred_check
      _
    $region23: #{tpu_custom_call.1} parent=1 // pred_check_branch
      %44 = sbr.rel (0) target = $region25
    $region24: #{tpu_custom_call.1} parent=1 // pred_region
      _
    $region25: #{tpu_custom_call.1} parent=1 // pred_fallthru
      _
    // Predicated region
    $region26: #{tpu_custom_call.1} parent=1 // pred_check
      _
    $region27: #{tpu_custom_call.1} parent=1 // pred_check_branch
      %46 = sbr.rel (0) target = $region29
    $region28: #{tpu_custom_call.1} parent=1 // pred_region
      _
    $region29: #{tpu_custom_call.1} parent=1 // pred_fallthru
      _
    // Predicated region
    $region30: #{tpu_custom_call.1} parent=1 // pred_check
      _
    $region31: #{tpu_custom_call.1} parent=1 // pred_check_branch
      %48 = sbr.rel (0) target = $region33
    $region32: #{tpu_custom_call.1} parent=1 // pred_region
      %49 = dma.done [#allocation3], 512
    $region33: #{tpu_custom_call.1} parent=1 // pred_fallthru
      _
    // Predicated region
    $region34: #{tpu_custom_call.1} parent=1 // pred_check
      _
    $region35: #{tpu_custom_call.1} parent=1 // pred_check_branch
      %51 = sbr.rel (0) target = $region37
    $region36: #{tpu_custom_call.1} parent=1 // pred_region
      %52 = dma.done [#allocation6], 1024
    $region37: #{tpu_custom_call.1} parent=1 // pred_fallthru
      _
    %v54 = vld [vmem:[#allocation5] sm:$0xff]
    %v55 = vld [vmem:[#allocation5 + $0x8] sm:$0xff]
    %v56 = vld [vmem:[#allocation5 + $0x10] sm:$0xff]
    %v57 = vld [vmem:[#allocation5 + $0x18] sm:$0xff]
    %v58 = vld [vmem:[#allocation5 + $0x20] sm:$0x1]
    %v59 = vld [vmem:[#allocation5 + $0x28] sm:$0x1]
    %v60 = vld [vmem:[#allocation5 + $0x30] sm:$0x1]
    %v61 = vld [vmem:[#allocation5 + $0x38] sm:$0x1]
    %v62 = vld [vmem:[#allocation2] sm:$0xff]
    %v63 = vld [vmem:[#allocation2 + $0x8] sm:$0xff]
    %v64 = vld [vmem:[#allocation2 + $0x10] sm:$0xff]
    %v65 = vld [vmem:[#allocation2 + $0x18] sm:$0xff]
    %v66 = vld [vmem:[%s2] sm:$0xf]
    %v67 = vld [vmem:[%s3] sm:$0xff]
    %68 = vrot.lane.b32.xlu0 %v62, 17
    %v69 = vpop.permute.xlu0 %68
    %70 = vrot.lane.b32.xlu0 %v63, 17
    %v71 = vpop.permute.xlu0 %70
    %72 = vrot.lane.b32.xlu0 %v64, 17
    %v73 = vpop.permute.xlu0 %72
    %74 = vrot.lane.b32.xlu0 %v65, 17
    %v75 = vpop.permute.xlu0 %74
    %v76 = vlaneseq
    %v77 = vand.u32 %v76, 127
    %vm78 = vcmp.lt.s32.totalorder %v77, 17
    %v79 = vsel %vm78, %v73, %v75
    %v80 = vsel %vm78, %v71, %v73
    %v81 = vsel %vm78, %v69, %v71
    %v82 = vsel %vm78, %v75, %v69
    %v83 = vlaneseq
    %v84 = vshrl.u32 %v83, 7
    %v85 = vsub.s32 0, %v84
    %v86 = vrot.slane %v54, %v85
    %v87 = vlaneseq
    %v88 = vshrl.u32 %v87, 7
    %v89 = vsub.s32 0, %v88
    %v90 = vrot.slane %v55, %v89
    %v91 = vlaneseq
    %v92 = vshrl.u32 %v91, 7
    %v93 = vsub.s32 0, %v92
    %v94 = vrot.slane %v56, %v93
    %v95 = vlaneseq
    %v96 = vshrl.u32 %v95, 7
    %v97 = vsub.s32 0, %v96
    %v98 = vrot.slane %v57, %v97
    %v99 = vmul.f32 %v82, %v86
    %v100 = vmul.f32 %v81, %v90
    %v101 = vmul.f32 %v80, %v94
    %v102 = vmul.f32 %v79, %v98
    %103 = vrot.lane.b32.xlu0 %v62, 16
    %v104 = vpop.permute.xlu0 %103
    %105 = vrot.lane.b32.xlu0 %v63, 16
    %v106 = vpop.permute.xlu0 %105
    %107 = vrot.lane.b32.xlu0 %v64, 16
    %v108 = vpop.permute.xlu0 %107
    %109 = vrot.lane.b32.xlu0 %v65, 16
    %v110 = vpop.permute.xlu0 %109
    %vm111 = vcmp.lt.s32.totalorder %v77, 16
    %v112 = vsel %vm111, %v108, %v110
    %v113 = vsel %vm111, %v106, %v108
    %v114 = vsel %vm111, %v104, %v106
    %v115 = vsel %vm111, %v110, %v104
    %v116 = vlaneseq
    %v117 = vshrl.u32 %v116, 7
    %v118 = vsub.s32 1, %v117
    %v119 = vrot.slane %v54, %v118
    %v120 = vlaneseq
    %v121 = vshrl.u32 %v120, 7
    %v122 = vsub.s32 1, %v121
    %v123 = vrot.slane %v55, %v122
    %v124 = vlaneseq
    %v125 = vshrl.u32 %v124, 7
    %v126 = vsub.s32 1, %v125
    %v127 = vrot.slane %v56, %v126
    %v128 = vlaneseq
    %v129 = vshrl.u32 %v128, 7
    %v130 = vsub.s32 1, %v129
    %v131 = vrot.slane %v57, %v130
    %v132 = vmul.f32 %v115, %v119
    %v133 = vmul.f32 %v114, %v123
    %v134 = vmul.f32 %v113, %v127
    %v135 = vmul.f32 %v112, %v131
    %136 = vrot.lane.b32.xlu0 %v62, 15
    %v137 = vpop.permute.xlu0 %136
    %138 = vrot.lane.b32.xlu0 %v63, 15
    %v139 = vpop.permute.xlu0 %138
    %140 = vrot.lane.b32.xlu0 %v64, 15
    %v141 = vpop.permute.xlu0 %140
    %142 = vrot.lane.b32.xlu0 %v65, 15
    %v143 = vpop.permute.xlu0 %142
    %vm144 = vcmp.lt.s32.totalorder %v77, 15
    %v145 = vsel %vm144, %v141, %v143
    %v146 = vsel %vm144, %v139, %v141
    %v147 = vsel %vm144, %v137, %v139
    %v148 = vsel %vm144, %v143, %v137
    %v149 = vlaneseq
    %v150 = vshrl.u32 %v149, 7
    %v151 = vsub.s32 2, %v150
    %v152 = vrot.slane %v54, %v151
    %v153 = vlaneseq
    %v154 = vshrl.u32 %v153, 7
    %v155 = vsub.s32 2, %v154
    %v156 = vrot.slane %v55, %v155
    %v157 = vlaneseq
    %v158 = vshrl.u32 %v157, 7
    %v159 = vsub.s32 2, %v158
    %v160 = vrot.slane %v56, %v159
    %v161 = vlaneseq
    %v162 = vshrl.u32 %v161, 7
    %v163 = vsub.s32 2, %v162
    %v164 = vrot.slane %v57, %v163
    %v165 = vmul.f32 %v148, %v152
    %v166 = vmul.f32 %v147, %v156
    %v167 = vmul.f32 %v146, %v160
    %v168 = vmul.f32 %v145, %v164
    %169 = vrot.lane.b32.xlu0 %v62, 1
    %v170 = vpop.permute.xlu0 %169
    %171 = vrot.lane.b32.xlu0 %v63, 1
    %v172 = vpop.permute.xlu0 %171
    %173 = vrot.lane.b32.xlu0 %v64, 1
    %v174 = vpop.permute.xlu0 %173
    %175 = vrot.lane.b32.xlu0 %v65, 1
    %v176 = vpop.permute.xlu0 %175
    %vm177 = vcmp.lt.s32.totalorder %v77, 1
    %v178 = vsel %vm177, %v174, %v176
    %v179 = vsel %vm177, %v172, %v174
    %v180 = vsel %vm177, %v170, %v172
    %v181 = vsel %vm177, %v176, %v170
    %v182 = vlaneseq
    %v183 = vshrl.u32 %v182, 7
    %v184 = vsub.s32 3, %v183
    %v185 = vrot.slane %v54, %v184
    %v186 = vlaneseq
    %v187 = vshrl.u32 %v186, 7
    %v188 = vsub.s32 3, %v187
    %v189 = vrot.slane %v55, %v188
    %v190 = vlaneseq
    %v191 = vshrl.u32 %v190, 7
    %v192 = vsub.s32 3, %v191
    %v193 = vrot.slane %v56, %v192
    %v194 = vlaneseq
    %v195 = vshrl.u32 %v194, 7
    %v196 = vsub.s32 3, %v195
    %v197 = vrot.slane %v57, %v196
    %v198 = vmul.f32 %v181, %v185
    %v199 = vmul.f32 %v180, %v189
    %v200 = vmul.f32 %v179, %v193
    %v201 = vmul.f32 %v178, %v197
    %202 = vrot.lane.b32.xlu0 %v62, 127
    %v203 = vpop.permute.xlu0 %202
    %204 = vrot.lane.b32.xlu0 %v63, 127
    %v205 = vpop.permute.xlu0 %204
    %206 = vrot.lane.b32.xlu0 %v64, 127
    %v207 = vpop.permute.xlu0 %206
    %208 = vrot.lane.b32.xlu0 %v65, 127
    %v209 = vpop.permute.xlu0 %208
    %vm210 = vcmp.lt.s32.totalorder %v77, 127
    %v211 = vsel %vm210, %v207, %v209
    %v212 = vsel %vm210, %v205, %v207
    %v213 = vsel %vm210, %v203, %v205
    %v214 = vsel %vm210, %v209, %v203
    %v215 = vlaneseq
    %v216 = vshrl.u32 %v215, 7
    %v217 = vsub.s32 5, %v216
    %v218 = vrot.slane %v54, %v217
    %v219 = vlaneseq
    %v220 = vshrl.u32 %v219, 7
    %v221 = vsub.s32 5, %v220
    %v222 = vrot.slane %v55, %v221
    %v223 = vlaneseq
    %v224 = vshrl.u32 %v223, 7
    %v225 = vsub.s32 5, %v224
    %v226 = vrot.slane %v56, %v225
    %v227 = vlaneseq
    %v228 = vshrl.u32 %v227, 7
    %v229 = vsub.s32 5, %v228
    %v230 = vrot.slane %v57, %v229
    %v231 = vmul.f32 %v213, %v218
    %v232 = vmul.f32 %v212, %v222
    %v233 = vmul.f32 %v211, %v226
    %v234 = vmul.f32 %v214, %v230
    %235 = vrot.lane.b32.xlu0 %v62, 113
    %v236 = vpop.permute.xlu0 %235
    %237 = vrot.lane.b32.xlu0 %v63, 113
    %v238 = vpop.permute.xlu0 %237
    %239 = vrot.lane.b32.xlu0 %v64, 113
    %v240 = vpop.permute.xlu0 %239
    %241 = vrot.lane.b32.xlu0 %v65, 113
    %v242 = vpop.permute.xlu0 %241
    %vm243 = vcmp.lt.s32.totalorder %v77, 113
    %v244 = vsel %vm243, %v240, %v242
    %v245 = vsel %vm243, %v238, %v240
    %v246 = vsel %vm243, %v236, %v238
    %v247 = vsel %vm243, %v242, %v236
    %v248 = vlaneseq
    %v249 = vshrl.u32 %v248, 7
    %v250 = vsub.s32 6, %v249
    %v251 = vrot.slane %v54, %v250
    %v252 = vlaneseq
    %v253 = vshrl.u32 %v252, 7
    %v254 = vsub.s32 6, %v253
    %v255 = vrot.slane %v55, %v254
    %v256 = vlaneseq
    %v257 = vshrl.u32 %v256, 7
    %v258 = vsub.s32 6, %v257
    %v259 = vrot.slane %v56, %v258
    %v260 = vlaneseq
    %v261 = vshrl.u32 %v260, 7
    %v262 = vsub.s32 6, %v261
    %v263 = vrot.slane %v57, %v262
    %v264 = vmul.f32 %v246, %v251
    %v265 = vmul.f32 %v245, %v255
    %v266 = vmul.f32 %v244, %v259
    %v267 = vmul.f32 %v247, %v263
    %268 = vrot.lane.b32.xlu0 %v62, 112
    %v269 = vpop.permute.xlu0 %268
    %270 = vrot.lane.b32.xlu0 %v63, 112
    %v271 = vpop.permute.xlu0 %270
    %272 = vrot.lane.b32.xlu0 %v64, 112
    %v273 = vpop.permute.xlu0 %272
    %274 = vrot.lane.b32.xlu0 %v65, 112
    %v275 = vpop.permute.xlu0 %274
    %vm276 = vcmp.lt.s32.totalorder %v77, 112
    %v277 = vsel %vm276, %v273, %v275
    %v278 = vsel %vm276, %v271, %v273
    %v279 = vsel %vm276, %v269, %v271
    %v280 = vsel %vm276, %v275, %v269
    %v281 = vlaneseq
    %v282 = vshrl.u32 %v281, 7
    %v283 = vsub.s32 7, %v282
    %v284 = vrot.slane %v54, %v283
    %v285 = vlaneseq
    %v286 = vshrl.u32 %v285, 7
    %v287 = vsub.s32 7, %v286
    %v288 = vrot.slane %v55, %v287
    %v289 = vlaneseq
    %v290 = vshrl.u32 %v289, 7
    %v291 = vsub.s32 7, %v290
    %v292 = vrot.slane %v56, %v291
    %v293 = vlaneseq
    %v294 = vshrl.u32 %v293, 7
    %v295 = vsub.s32 7, %v294
    %v296 = vrot.slane %v57, %v295
    %v297 = vmul.f32 %v279, %v284
    %v298 = vmul.f32 %v278, %v288
    %v299 = vmul.f32 %v277, %v292
    %v300 = vmul.f32 %v280, %v296
    %301 = vrot.lane.b32.xlu0 %v62, 111
    %v302 = vpop.permute.xlu0 %301
    %303 = vrot.lane.b32.xlu0 %v63, 111
    %v304 = vpop.permute.xlu0 %303
    %305 = vrot.lane.b32.xlu0 %v64, 111
    %v306 = vpop.permute.xlu0 %305
    %307 = vrot.lane.b32.xlu0 %v65, 111
    %v308 = vpop.permute.xlu0 %307
    %vm309 = vcmp.lt.s32.totalorder %v77, 111
    %v310 = vsel %vm309, %v306, %v308
    %v311 = vsel %vm309, %v304, %v306
    %v312 = vsel %vm309, %v302, %v304
    %v313 = vsel %vm309, %v308, %v302
    %v314 = vlaneseq
    %v315 = vshrl.u32 %v314, 7
    %v316 = vsub.s32 0, %v315
    %v317 = vrot.slane %v58, %v316
    %v318 = vlaneseq
    %v319 = vshrl.u32 %v318, 7
    %v320 = vsub.s32 0, %v319
    %v321 = vrot.slane %v59, %v320
    %v322 = vlaneseq
    %v323 = vshrl.u32 %v322, 7
    %v324 = vsub.s32 0, %v323
    %v325 = vrot.slane %v60, %v324
    %v326 = vlaneseq
    %v327 = vshrl.u32 %v326, 7
    %v328 = vsub.s32 0, %v327
    %v329 = vrot.slane %v61, %v328
    %v330 = vmul.f32 %v312, %v317
    %v331 = vmul.f32 %v311, %v321
    %v332 = vmul.f32 %v310, %v325
    %v333 = vmul.f32 %v313, %v329
    %v334 = vpack.c.bf16 %v132, %v99
    %v335 = vpack.c.bf16 %v133, %v100
    %v336 = vpack.c.bf16 %v134, %v101
    %v337 = vpack.c.bf16 %v135, %v102
    %v338 = vpack.c.bf16 %v198, %v165
    %v339 = vpack.c.bf16 %v199, %v166
    %v340 = vpack.c.bf16 %v200, %v167
    %v341 = vpack.c.bf16 %v201, %v168
    %v342 = vpack.c.bf16 %v231, %v62
    %v343 = vpack.c.bf16 %v232, %v63
    %v344 = vpack.c.bf16 %v233, %v64
    %v345 = vpack.c.bf16 %v234, %v65
    %v346 = vpack.c.bf16 %v297, %v264
    %v347 = vpack.c.bf16 %v298, %v265
    %v348 = vpack.c.bf16 %v299, %v266
    %v349 = vpack.c.bf16 %v300, %v267
    %v350 = vpack.c.bf16 %v330, %v330
    %v351 = vpack.c.bf16 %v331, %v331
    %v352 = vpack.c.bf16 %v332, %v332
    %v353 = vpack.c.bf16 %v333, %v333
    %355 = vset.pattern.permute.xlu0 0
    %356 = vperm.xlu0 %355, %v67
    %v357 = vpop.permute.xlu0 %356
    %vm359 = vcmask 588800
    %v361 = vsel %vm359, %v66, 0
    %vm363 = vcmask 1043456
    %v365 = vsel %vm363, %v350, 0
    %v368 = vsel %vm363, %v351, 0
    %v371 = vsel %vm363, %v352, 0
    %v374 = vsel %vm363, %v353, 0
    %376 = vmatprep.subr.bf16.mxu0 0
    %377 = vmatpush1.bf16.msra.mxu0 0
    %378 = vmatprep.subr.bf16.mxu0 0
    %379 = vmatpush1.bf16.msra.mxu0 0
    %380 = vmatprep.subr.bf16.mxu0 0
    %381 = vmatpush1.bf16.msra.mxu0 0
    %382 = vmatprep.subr.bf16.mxu0 %v368
    %383 = vmatpush1.bf16.msra.mxu0 %v365
    %384 = vmatprep.subr.bf16.mxu0 %v347
    %385 = vmatpush1.bf16.msra.mxu0 %v346
    %386 = vmatprep.subr.bf16.mxu0 %v343
    %387 = vmatpush1.bf16.msra.mxu0 %v342
    %388 = vmatprep.subr.bf16.mxu0 %v339
    %389 = vmatpush1.bf16.msra.mxu0 %v338
    %390 = vmatprep.subr.bf16.mxu0 %v335
    %391 = vmatpush1.bf16.msra.mxu0 %v334
    %392 = vmatprep.subr.bf16.mxu0 0
    %393 = vmatpush2.bf16.msra.mxu0 0
    %394 = vmatprep.subr.bf16.mxu0 0
    %395 = vmatpush2.bf16.msra.mxu0 0
    %396 = vmatprep.subr.bf16.mxu0 0
    %397 = vmatpush2.bf16.msra.mxu0 0
    %398 = vmatprep.subr.bf16.mxu0 0
    %399 = vmatpush2.bf16.msra.mxu0 0
    %400 = vmatprep.subr.bf16.mxu0 0
    %401 = vmatpush2.bf16.msra.mxu0 0
    %402 = vmatprep.subr.bf16.mxu0 0
    %403 = vmatpush2.bf16.msra.mxu0 0
    %404 = vmatprep.subr.bf16.mxu0 0
    %405 = vmatpush2.bf16.msra.mxu0 0
    %406 = vmatprep.subr.bf16.mxu0 0
    %407 = vmatpush2.bf16.msra.mxu0 0
    %408 = vmatprep.mubr.bf16.mxu0 0
    %409 = vmatmul.mubr.bf16.gmra.mxu0 %v361
    %v410 = vpop.f32.mrf.mxu0
    %v411 = vadd.f32 %v357, %v410
    %v412 = vpop.f32.mrf.mxu0
    %v413 = vadd.f32 %v357, %v412
    %v414 = vpop.f32.mrf.mxu0
    %v415 = vpop.f32.mrf.mxu0
    %416 = vdwg.mxu0
    %417 = vmatprep.subr.bf16.mxu0 0
    %418 = vmatpush1.bf16.msra.mxu0 0
    %419 = vmatprep.subr.bf16.mxu0 0
    %420 = vmatpush1.bf16.msra.mxu0 0
    %421 = vmatprep.subr.bf16.mxu0 0
    %422 = vmatpush1.bf16.msra.mxu0 0
    %423 = vmatprep.subr.bf16.mxu0 %v374
    %424 = vmatpush1.bf16.msra.mxu0 %v371
    %425 = vmatprep.subr.bf16.mxu0 %v349
    %426 = vmatpush1.bf16.msra.mxu0 %v348
    %427 = vmatprep.subr.bf16.mxu0 %v345
    %428 = vmatpush1.bf16.msra.mxu0 %v344
    %429 = vmatprep.subr.bf16.mxu0 %v341
    %430 = vmatpush1.bf16.msra.mxu0 %v340
    %431 = vmatprep.subr.bf16.mxu0 %v337
    %432 = vmatpush1.bf16.msra.mxu0 %v336
    %433 = vmatprep.subr.bf16.mxu0 0
    %434 = vmatpush2.bf16.msra.mxu0 0
    %435 = vmatprep.subr.bf16.mxu0 0
    %436 = vmatpush2.bf16.msra.mxu0 0
    %437 = vmatprep.subr.bf16.mxu0 0
    %438 = vmatpush2.bf16.msra.mxu0 0
    %439 = vmatprep.subr.bf16.mxu0 0
    %440 = vmatpush2.bf16.msra.mxu0 0
    %441 = vmatprep.subr.bf16.mxu0 0
    %442 = vmatpush2.bf16.msra.mxu0 0
    %443 = vmatprep.subr.bf16.mxu0 0
    %444 = vmatpush2.bf16.msra.mxu0 0
    %445 = vmatprep.subr.bf16.mxu0 0
    %446 = vmatpush2.bf16.msra.mxu0 0
    %447 = vmatprep.subr.bf16.mxu0 0
    %448 = vmatpush2.bf16.msra.mxu0 0
    %449 = vmatprep.mubr.bf16.mxu0 0
    %450 = vmatmul.mubr.bf16.gmra.mxu0 %v361
    %v451 = vpop.f32.mrf.mxu0
    %v452 = vadd.f32 %v357, %v451
    %v453 = vpop.f32.mrf.mxu0
    %v454 = vadd.f32 %v357, %v453
    %v455 = vpop.f32.mrf.mxu0
    %v456 = vpop.f32.mrf.mxu0
    %457 = vdwg.mxu0
    %v458 = vld [vmem:[%s4] sm:$0x3]
    %v459 = vld [vmem:[%s5] sm:$0xf]
    %460 = vrot.lane.b32.xlu0 %v411, 17
    %v461 = vpop.permute.xlu0 %460
    %462 = vrot.lane.b32.xlu0 %v413, 17
    %v463 = vpop.permute.xlu0 %462
    %464 = vrot.lane.b32.xlu0 %v452, 17
    %v465 = vpop.permute.xlu0 %464
    %466 = vrot.lane.b32.xlu0 %v454, 17
    %v467 = vpop.permute.xlu0 %466
    %v468 = vsel %vm78, %v465, %v467
    %v469 = vsel %vm78, %v463, %v465
    %v470 = vsel %vm78, %v461, %v463
    %v471 = vsel %vm78, %v467, %v461
    %v472 = vmul.f32 %v471, %v86
    %v473 = vmul.f32 %v470, %v90
    %v474 = vmul.f32 %v469, %v94
    %v475 = vmul.f32 %v468, %v98
    %476 = vrot.lane.b32.xlu0 %v411, 16
    %v477 = vpop.permute.xlu0 %476
    %478 = vrot.lane.b32.xlu0 %v413, 16
    %v479 = vpop.permute.xlu0 %478
    %480 = vrot.lane.b32.xlu0 %v452, 16
    %v481 = vpop.permute.xlu0 %480
    %482 = vrot.lane.b32.xlu0 %v454, 16
    %v483 = vpop.permute.xlu0 %482
    %v484 = vsel %vm111, %v481, %v483
    %v485 = vsel %vm111, %v479, %v481
    %v486 = vsel %vm111, %v477, %v479
    %v487 = vsel %vm111, %v483, %v477
    %v488 = vmul.f32 %v487, %v119
    %v489 = vmul.f32 %v486, %v123
    %v490 = vmul.f32 %v485, %v127
    %v491 = vmul.f32 %v484, %v131
    %492 = vrot.lane.b32.xlu0 %v411, 15
    %v493 = vpop.permute.xlu0 %492
    %494 = vrot.lane.b32.xlu0 %v413, 15
    %v495 = vpop.permute.xlu0 %494
    %496 = vrot.lane.b32.xlu0 %v452, 15
    %v497 = vpop.permute.xlu0 %496
    %498 = vrot.lane.b32.xlu0 %v454, 15
    %v499 = vpop.permute.xlu0 %498
    %v500 = vsel %vm144, %v497, %v499
    %v501 = vsel %vm144, %v495, %v497
    %v502 = vsel %vm144, %v493, %v495
    %v503 = vsel %vm144, %v499, %v493
    %v504 = vmul.f32 %v503, %v152
    %v505 = vmul.f32 %v502, %v156
    %v506 = vmul.f32 %v501, %v160
    %v507 = vmul.f32 %v500, %v164
    %508 = vrot.lane.b32.xlu0 %v411, 1
    %v509 = vpop.permute.xlu0 %508
    %510 = vrot.lane.b32.xlu0 %v413, 1
    %v511 = vpop.permute.xlu0 %510
    %512 = vrot.lane.b32.xlu0 %v452, 1
    %v513 = vpop.permute.xlu0 %512
    %514 = vrot.lane.b32.xlu0 %v454, 1
    %v515 = vpop.permute.xlu0 %514
    %v516 = vsel %vm177, %v513, %v515
    %v517 = vsel %vm177, %v511, %v513
    %v518 = vsel %vm177, %v509, %v511
    %v519 = vsel %vm177, %v515, %v509
    %v520 = vmul.f32 %v519, %v185
    %v521 = vmul.f32 %v518, %v189
    %v522 = vmul.f32 %v517, %v193
    %v523 = vmul.f32 %v516, %v197
    %524 = vrot.lane.b32.xlu0 %v411, 127
    %v525 = vpop.permute.xlu0 %524
    %526 = vrot.lane.b32.xlu0 %v413, 127
    %v527 = vpop.permute.xlu0 %526
    %528 = vrot.lane.b32.xlu0 %v452, 127
    %v529 = vpop.permute.xlu0 %528
    %530 = vrot.lane.b32.xlu0 %v454, 127
    %v531 = vpop.permute.xlu0 %530
    %v532 = vsel %vm210, %v529, %v531
    %v533 = vsel %vm210, %v527, %v529
    %v534 = vsel %vm210, %v525, %v527
    %v535 = vsel %vm210, %v531, %v525
    %v536 = vmul.f32 %v534, %v218
    %v537 = vmul.f32 %v533, %v222
    %v538 = vmul.f32 %v532, %v226
    %v539 = vmul.f32 %v535, %v230
    %540 = vrot.lane.b32.xlu0 %v411, 113
    %v541 = vpop.permute.xlu0 %540
    %542 = vrot.lane.b32.xlu0 %v413, 113
    %v543 = vpop.permute.xlu0 %542
    %544 = vrot.lane.b32.xlu0 %v452, 113
    %v545 = vpop.permute.xlu0 %544
    %546 = vrot.lane.b32.xlu0 %v454, 113
    %v547 = vpop.permute.xlu0 %546
    %v548 = vsel %vm243, %v545, %v547
    %v549 = vsel %vm243, %v543, %v545
    %v550 = vsel %vm243, %v541, %v543
    %v551 = vsel %vm243, %v547, %v541
    %v552 = vmul.f32 %v550, %v251
    %v553 = vmul.f32 %v549, %v255
    %v554 = vmul.f32 %v548, %v259
    %v555 = vmul.f32 %v551, %v263
    %556 = vrot.lane.b32.xlu0 %v411, 112
    %v557 = vpop.permute.xlu0 %556
    %558 = vrot.lane.b32.xlu0 %v413, 112
    %v559 = vpop.permute.xlu0 %558
    %560 = vrot.lane.b32.xlu0 %v452, 112
    %v561 = vpop.permute.xlu0 %560
    %562 = vrot.lane.b32.xlu0 %v454, 112
    %v563 = vpop.permute.xlu0 %562
    %v564 = vsel %vm276, %v561, %v563
    %v565 = vsel %vm276, %v559, %v561
    %v566 = vsel %vm276, %v557, %v559
    %v567 = vsel %vm276, %v563, %v557
    %v568 = vmul.f32 %v566, %v284
    %v569 = vmul.f32 %v565, %v288
    %v570 = vmul.f32 %v564, %v292
    %v571 = vmul.f32 %v567, %v296
    %572 = vrot.lane.b32.xlu0 %v411, 111
    %v573 = vpop.permute.xlu0 %572
    %574 = vrot.lane.b32.xlu0 %v413, 111
    %v575 = vpop.permute.xlu0 %574
    %576 = vrot.lane.b32.xlu0 %v452, 111
    %v577 = vpop.permute.xlu0 %576
    %578 = vrot.lane.b32.xlu0 %v454, 111
    %v579 = vpop.permute.xlu0 %578
    %v580 = vsel %vm309, %v577, %v579
    %v581 = vsel %vm309, %v575, %v577
    %v582 = vsel %vm309, %v573, %v575
    %v583 = vsel %vm309, %v579, %v573
    %v584 = vmul.f32 %v582, %v317
    %v585 = vmul.f32 %v581, %v321
    %v586 = vmul.f32 %v580, %v325
    %v587 = vmul.f32 %v583, %v329
    %v588 = vpack.c.bf16 %v488, %v472
    %v589 = vpack.c.bf16 %v489, %v473
    %v590 = vpack.c.bf16 %v490, %v474
    %v591 = vpack.c.bf16 %v491, %v475
    %v592 = vpack.c.bf16 %v520, %v504
    %v593 = vpack.c.bf16 %v521, %v505
    %v594 = vpack.c.bf16 %v522, %v506
    %v595 = vpack.c.bf16 %v523, %v507
    %v596 = vpack.c.bf16 %v536, %v411
    %v597 = vpack.c.bf16 %v537, %v413
    %v598 = vpack.c.bf16 %v538, %v452
    %v599 = vpack.c.bf16 %v539, %v454
    %v600 = vpack.c.bf16 %v568, %v552
    %v601 = vpack.c.bf16 %v569, %v553
    %v602 = vpack.c.bf16 %v570, %v554
    %v603 = vpack.c.bf16 %v571, %v555
    %v604 = vpack.c.bf16 %v584, %v584
    %v605 = vpack.c.bf16 %v585, %v585
    %v606 = vpack.c.bf16 %v586, %v586
    %v607 = vpack.c.bf16 %v587, %v587
    %609 = vset.pattern.permute.xlu0 0
    %610 = vperm.xlu0 %609, %v459
    %v611 = vpop.permute.xlu0 %610
    %v614 = vsel %vm359, %v458, 0
    %v617 = vsel %vm363, %v604, 0
    %v620 = vsel %vm363, %v605, 0
    %v623 = vsel %vm363, %v606, 0
    %v626 = vsel %vm363, %v607, 0
    %628 = vmatprep.subr.bf16.mxu0 0
    %629 = vmatpush1.bf16.msra.mxu0 0
    %630 = vmatprep.subr.bf16.mxu0 0
    %631 = vmatpush1.bf16.msra.mxu0 0
    %632 = vmatprep.subr.bf16.mxu0 0
    %633 = vmatpush1.bf16.msra.mxu0 0
    %634 = vmatprep.subr.bf16.mxu0 %v620
    %635 = vmatpush1.bf16.msra.mxu0 %v617
    %636 = vmatprep.subr.bf16.mxu0 %v601
    %637 = vmatpush1.bf16.msra.mxu0 %v600
    %638 = vmatprep.subr.bf16.mxu0 %v597
    %639 = vmatpush1.bf16.msra.mxu0 %v596
    %640 = vmatprep.subr.bf16.mxu0 %v593
    %641 = vmatpush1.bf16.msra.mxu0 %v592
    %642 = vmatprep.subr.bf16.mxu0 %v589
    %643 = vmatpush1.bf16.msra.mxu0 %v588
    %644 = vmatprep.subr.bf16.mxu0 0
    %645 = vmatpush2.bf16.msra.mxu0 0
    %646 = vmatprep.subr.bf16.mxu0 0
    %647 = vmatpush2.bf16.msra.mxu0 0
    %648 = vmatprep.subr.bf16.mxu0 0
    %649 = vmatpush2.bf16.msra.mxu0 0
    %650 = vmatprep.subr.bf16.mxu0 0
    %651 = vmatpush2.bf16.msra.mxu0 0
    %652 = vmatprep.subr.bf16.mxu0 0
    %653 = vmatpush2.bf16.msra.mxu0 0
    %654 = vmatprep.subr.bf16.mxu0 0
    %655 = vmatpush2.bf16.msra.mxu0 0
    %656 = vmatprep.subr.bf16.mxu0 0
    %657 = vmatpush2.bf16.msra.mxu0 0
    %658 = vmatprep.subr.bf16.mxu0 0
    %659 = vmatpush2.bf16.msra.mxu0 0
    %660 = vmatprep.mubr.bf16.mxu0 0
    %661 = vmatmul.mubr.bf16.gmra.mxu0 %v614
    %v662 = vpop.f32.mrf.mxu0
    %v663 = vadd.f32 %v611, %v662
    %v664 = vpop.f32.mrf.mxu0
    %v665 = vadd.f32 %v611, %v664
    %v666 = vpop.f32.mrf.mxu0
    %v667 = vpop.f32.mrf.mxu0
    %668 = vdwg.mxu0
    %669 = vmatprep.subr.bf16.mxu0 0
    %670 = vmatpush1.bf16.msra.mxu0 0
    %671 = vmatprep.subr.bf16.mxu0 0
    %672 = vmatpush1.bf16.msra.mxu0 0
    %673 = vmatprep.subr.bf16.mxu0 0
    %674 = vmatpush1.bf16.msra.mxu0 0
    %675 = vmatprep.subr.bf16.mxu0 %v626
    %676 = vmatpush1.bf16.msra.mxu0 %v623
    %677 = vmatprep.subr.bf16.mxu0 %v603
    %678 = vmatpush1.bf16.msra.mxu0 %v602
    %679 = vmatprep.subr.bf16.mxu0 %v599
    %680 = vmatpush1.bf16.msra.mxu0 %v598
    %681 = vmatprep.subr.bf16.mxu0 %v595
    %682 = vmatpush1.bf16.msra.mxu0 %v594
    %683 = vmatprep.subr.bf16.mxu0 %v591
    %684 = vmatpush1.bf16.msra.mxu0 %v590
    %685 = vmatprep.subr.bf16.mxu0 0
    %686 = vmatpush2.bf16.msra.mxu0 0
    %687 = vmatprep.subr.bf16.mxu0 0
    %688 = vmatpush2.bf16.msra.mxu0 0
    %689 = vmatprep.subr.bf16.mxu0 0
    %690 = vmatpush2.bf16.msra.mxu0 0
    %691 = vmatprep.subr.bf16.mxu0 0
    %692 = vmatpush2.bf16.msra.mxu0 0
    %693 = vmatprep.subr.bf16.mxu0 0
    %694 = vmatpush2.bf16.msra.mxu0 0
    %695 = vmatprep.subr.bf16.mxu0 0
    %696 = vmatpush2.bf16.msra.mxu0 0
    %697 = vmatprep.subr.bf16.mxu0 0
    %698 = vmatpush2.bf16.msra.mxu0 0
    %699 = vmatprep.subr.bf16.mxu0 0
    %700 = vmatpush2.bf16.msra.mxu0 0
    %701 = vmatprep.mubr.bf16.mxu0 0
    %702 = vmatmul.mubr.bf16.gmra.mxu0 %v614
    %v703 = vpop.f32.mrf.mxu0
    %v704 = vadd.f32 %v611, %v703
    %v705 = vpop.f32.mrf.mxu0
    %v706 = vadd.f32 %v611, %v705
    %v707 = vpop.f32.mrf.mxu0
    %v708 = vpop.f32.mrf.mxu0
    %709 = vdwg.mxu0
    %vm710 = vcmp.gt.f32.partialorder %v663, 20.0
    %vm711 = vcmp.gt.f32.partialorder %v665, 20.0
    %vm712 = vcmp.gt.f32.partialorder %v704, 20.0
    %vm713 = vcmp.gt.f32.partialorder %v706, 20.0
    %v714 = vmin.f32 %v663, 20.0
    %v715 = vmin.f32 %v665, 20.0
    %v716 = vmin.f32 %v704, 20.0
    %v717 = vmin.f32 %v706, 20.0
    %v718 = vmul.f32 %v714, 1.442695
    %v719 = vpow.pop %v718
    %v720 = vmul.f32 %v715, 1.442695
    %v721 = vpow.pop %v720
    %v722 = vmul.f32 %v716, 1.442695
    %v723 = vpow.pop %v722
    %v724 = vmul.f32 %v717, 1.442695
    %v725 = vpow.pop %v724
    %v726 = vadd.f32 %v719, 1.0
    %v727 = vlog2.pop %v726
    %v728 = vmul.f32 %v727, 0.6931472
    %v729 = vmul.f32 -0.5, %v719
    %v730 = vadd.f32 %v729, 1.0
    %v731 = vmul.f32 %v730, %v719
    %v732 = vand.u32 2147483647, %v719
    %vm733 = vcmp.lt.f32.partialorder %v732, 0.0004427343
    %v734 = vsel %vm733, %v731, %v728
    %v735 = vadd.f32 %v721, 1.0
    %v736 = vlog2.pop %v735
    %v737 = vmul.f32 %v736, 0.6931472
    %v738 = vmul.f32 -0.5, %v721
    %v739 = vadd.f32 %v738, 1.0
    %v740 = vmul.f32 %v739, %v721
    %v741 = vand.u32 2147483647, %v721
    %vm742 = vcmp.lt.f32.partialorder %v741, 0.0004427343
    %v743 = vsel %vm742, %v740, %v737
    %v744 = vadd.f32 %v723, 1.0
    %v745 = vlog2.pop %v744
    %v746 = vmul.f32 %v745, 0.6931472
    %v747 = vmul.f32 -0.5, %v723
    %v748 = vadd.f32 %v747, 1.0
    %v749 = vmul.f32 %v748, %v723
    %v750 = vand.u32 2147483647, %v723
    %vm751 = vcmp.lt.f32.partialorder %v750, 0.0004427343
    %v752 = vsel %vm751, %v749, %v746
    %v753 = vadd.f32 %v725, 1.0
    %v754 = vlog2.pop %v753
    %v755 = vmul.f32 %v754, 0.6931472
    %v756 = vmul.f32 -0.5, %v725
    %v757 = vadd.f32 %v756, 1.0
    %v758 = vmul.f32 %v757, %v725
    %v759 = vand.u32 2147483647, %v725
    %vm760 = vcmp.lt.f32.partialorder %v759, 0.0004427343
    %v761 = vsel %vm760, %v758, %v755
    %v762 = vsel %vm710, %v663, %v734
    %v763 = vsel %vm711, %v665, %v743
    %v764 = vsel %vm712, %v704, %v752
    %v765 = vsel %vm713, %v706, %v761
    %v766 = vld [vmem:[%s6] sm:$0xff]
    %v768 = vcombine.low %v766, %v766
    %v770 = vunpack.c.l.s4 1983009808
    %v771 = vunpack.c.0.s8 %v770
    %v772 = vlaneseq
    %v773 = vshrl.u32 %v772, 7
    %v774 = vsub.s32 %v771, %v773
    %v775 = vrot.slane %v768, %v774
    %v777 = vunpack.c.l.s4 1983009808
    %v778 = vunpack.c.0.s8 %v777
    %v779 = vlaneseq
    %v780 = vshrl.u32 %v779, 7
    %v781 = vsub.s32 %v778, %v780
    %v782 = vrot.slane %v766, %v781
    %v783 = vcombine.high %v775, %v775
    %v784 = vcombine.high %v782, %v782
    %v789 = vmul.f32 %v762, %v775
    %v790 = vmul.f32 %v763, %v783
    %v791 = vmul.f32 %v764, %v782
    %v792 = vmul.f32 %v765, %v784
    %v797 = vrot.slane %v789, 2
    %v798 = vrot.slane %v790, 2
    %v799 = vrot.slane %v791, 2
    %v800 = vrot.slane %v792, 2
    %v805 = vadd.f32 %v663, %v797
    %v806 = vadd.f32 %v665, %v798
    %v807 = vadd.f32 %v704, %v799
    %v808 = vadd.f32 %v706, %v800
    %v813 = vrot.slane %v805, 4
    %v814 = vrot.slane %v806, 4
    %v815 = vrot.slane %v807, 4
    %v816 = vrot.slane %v808, 4
    %vm821 = vcmask 1041408
    %v822 = vsel %vm821, %v663, %v762
    %v823 = vsel %vm821, %v665, %v763
    %v824 = vsel %vm821, %v704, %v764
    %v825 = vsel %vm821, %v706, %v765
    %v826 = vsel %vm363, %v822, %v813
    %v827 = vsel %vm363, %v823, %v814
    %v828 = vsel %vm363, %v824, %v815
    %v829 = vsel %vm363, %v825, %v816
    %830 = vst [vmem:[#allocation7] sm:$0x3f] %v826
    %831 = vst [vmem:[#allocation7 + $0x8] sm:$0x3f] %v827
    %832 = vst [vmem:[#allocation7 + $0x10] sm:$0x3f] %v828
    %833 = vst [vmem:[#allocation7 + $0x18] sm:$0x3f] %v829
    // Predicated region
    $region38: #{tpu_custom_call.1} parent=1 // pred_check
      _
    $region39: #{tpu_custom_call.1} parent=1 // pred_check_branch
      %835 = sbr.rel (0) target = $region41
    $region40: #{tpu_custom_call.1} parent=1 // pred_region
      %s837 = ssub.s32 512, 512
      %838 = vsyncadd [#allocation4], %s837
      %s840 = sshll.u32 [#allocation7], 4
      %s841 = int_to_ptr.vmem [resolvable:$true] %s840
      %843 = dma.vmem_to_hbm [thread:$0]  %s841, 512, %s7, [#allocation4]
    $region41: #{tpu_custom_call.1} parent=1 // pred_fallthru
      _
    // Predicated region
    $region42: #{tpu_custom_call.1} parent=1 // pred_check
      _
    $region43: #{tpu_custom_call.1} parent=1 // pred_check_branch
      %845 = sbr.rel (0) target = $region45
    $region44: #{tpu_custom_call.1} parent=1 // pred_region
      %846 = dma.done [#allocation4], 512
    $region45: #{tpu_custom_call.1} parent=1 // pred_fallthru
      _
    %847 = vsyncpa [#allocation3], 1
    %848 = vsyncpa [#allocation6], 1
    %849 = vsyncpa [#allocation4], 1

</llo_original>
